<compile_context>
chip_gen: v6e
topology: v6e:2x2x1
jax: 0.10.0
libtpu: 0.0.40
codegen_flags: <defaults>
</compile_context>

<pallas_src>
import functools

import jax
import jax.numpy as jnp
from jax.experimental import pallas as pl
from jax.experimental.pallas import tpu as pltpu


# ----------------------------- Pallas kernel -----------------------------

def _likelihood_kernel(*refs, n_orient, disable_occ, inv_t_obj, inv_t_clu,
                       total_s, tile_s, needs_mask):
    # Ref order: proj, pred, [pow], clu, [mask], out
    it = iter(refs)
    proj_ref = next(it)                                   # (O, F, TS)
    pred_ref = next(it)                                   # (F, TS)
    pow_ref = next(it) if n_orient > 1 else None          # (O, TS)
    clu_ref = next(it)                                    # (1, TS)
    mask_ref = next(it) if disable_occ else None          # (1, TS)
    out_ref = next(it)                                    # (1, 1) resident accumulator

    s_idx = pl.program_id(1)

    @pl.when(s_idx == 0)
    def _init():
        out_ref[...] = jnp.zeros_like(out_ref)

    pred = pred_ref[...].astype(jnp.float32)              # (F, TS)

    # torch.nn.functional.normalize(p=2, dim=F, eps=1e-12) followed by <., predicted_map>_F:
    #   score_o = dot_o / max(||proj_o||, 1e-12) == dot_o * rsqrt(max(||proj_o||^2, 1e-24))
    # Per-orientation loop keeps the f32 working set at (F, TS) and fuses the orientation
    # weighting into the same pass.
    obj = None
    for o in range(n_orient):
        p = proj_ref[o].astype(jnp.float32)                            # (F, TS)
        normsq = jnp.sum(p * p, axis=0, keepdims=True)                 # (1, TS)
        dot = jnp.sum(p * pred, axis=0, keepdims=True)                 # (1, TS)
        score = dot * jax.lax.rsqrt(jnp.maximum(normsq, 1e-24))        # (1, TS)
        if n_orient > 1:
            score = score * pow_ref[o:o + 1, :].astype(jnp.float32)
        obj = score if obj is None else obj + score                    # (1, TS)

    clu = clu_ref[...].astype(jnp.float32)                             # (1, TS)

    # NOTE: the reference forces options.bUseVariance = False -> pixel_var branches omitted.

    if disable_occ:
        m = mask_ref[...].astype(jnp.float32)                          # (1, TS)
        contrib = obj * m + clu * (1.0 - m)            # heatmap; loss = 1 - mean(heat)
    else:
        # soft_loss_fun(obj, clu, normalize=True, reduce='mean', mask=None, t=1/10)
        a = jnp.clip(0.5 * obj + 0.5, 1e-8, 1.0)
        b = 0.5 * clu + 0.5
        ua = a * inv_t_obj
        ub = b * inv_t_clu
        mx = jnp.maximum(ua, ub)                       # softmax stabilization
        ea = jnp.exp(ua - mx)
        eb = jnp.exp(ub - mx)
        contrib = (a * ea + b * eb) * pl.reciprocal(ea + eb, approx=True)  # soft max

    if needs_mask:
        # Tail tile: zero out lanes beyond the true spatial extent (select also kills any
        # NaN/Inf coming from out-of-bounds block padding).
        lane = jax.lax.broadcasted_iota(jnp.int32, contrib.shape, 1)
        valid = (s_idx * tile_s + lane) < total_s
        contrib = jnp.where(valid, contrib, 0.0)

    out_ref[...] = out_ref[...] + jnp.sum(contrib)

    @pl.when(s_idx == pl.num_programs(1) - 1)
    def _finalize():
        # loss_b = 1 - mean over the TRUE H*W (per-tile partial sums accumulated above).
        out_ref[...] = 1.0 - out_ref[...] * (1.0 / float(total_s))


# ----------------------------- wrapper (glue) -----------------------------

def _choose_spatial_tile(S, n_orient, F, dtype, disable_occ):
    """Spatial tile (lanes) sized so the double-buffered input footprint stays ~<= 8 MiB,
    leaving room for the (F, TS) f32 working set under v5e's 16 MiB default scoped VMEM and
    v7x's smaller physical VMEM."""
    itemsize = jnp.dtype(dtype).itemsize
    per_lane = (n_orient * F + F) * itemsize           # projected + predicted maps
    if n_orient > 1:
        per_lane += n_orient * itemsize                # orientation weights
    per_lane += (2 if disable_occ else 1) * 4          # clutter (+ mask), conservative f32
    ts = (8 * 1024 * 1024) // (2 * max(per_lane, 1))   # 2-deep pipelining
    ts = max(128, min(2048, (ts // 128) * 128))
    if S <= ts:
        return int(S)        # single full-extent tile (always a legal block dim)
    return int(ts)


def likelihood_loss_pallas(projected_map, predicted_map, clutter_scores, mask,
                           pixel_orient_weights, n_orient, pixel_var, options,
                           reduction='mean', loss_weight=1.0, spatial_tile=None):
    """Pallas implementation of LikelihoodLoss.forward."""
    del pixel_var  # bUseVariance is force-disabled in the reference -> pixel_var is unused.

    B, C, H, W = projected_map.shape
    F = C // n_orient
    S = H * W
    disable_occ = bool(getattr(options, "disable_occ", False))

    # No dtype casts here: the kernel upcasts each tile to f32 on load, so HBM traffic stays
    # at the native (e.g. bf16) width. Reshapes are metadata-only (contiguous).
    proj = projected_map.reshape(B, n_orient, F, S)
    pred = predicted_map.reshape(B, F, S)
    clu = clutter_scores.reshape(B, 1, S)

    ts = spatial_tile if spatial_tile is not None else _choose_spatial_tile(
        S, n_orient, F, proj.dtype, disable_occ)
    num_s = pl.cdiv(S, ts)

    in_specs = [
        pl.BlockSpec((None, n_orient, F, ts), lambda b, s: (b, 0, 0, s)),  # projected_map
        pl.BlockSpec((None, F, ts), lambda b, s: (b, 0, s)),               # predicted_map
    ]
    inputs = [proj, pred]
    if n_orient > 1:
        in_specs.append(pl.BlockSpec((None, n_orient, ts), lambda b, s: (b, 0, s)))
        inputs.append(pixel_orient_weights.reshape(B, n_orient, S))
    in_specs.append(pl.BlockSpec((None, 1, ts), lambda b, s: (b, 0, s)))   # clutter
    inputs.append(clu)
    if disable_occ:
        in_specs.append(pl.BlockSpec((None, 1, ts), lambda b, s: (b, 0, s)))  # mask
        inputs.append(mask.reshape(B, 1, S))

    kernel = functools.partial(
        _likelihood_kernel,
        n_orient=n_orient,
        disable_occ=disable_occ,
        inv_t_obj=10.0,    # t_obj = 1/10
        inv_t_clu=10.0,    # t_clu = 1/10
        total_s=S,
        tile_s=ts,
        needs_mask=(S % ts != 0),
    )

    per_batch = pl.pallas_call(
        kernel,
        out_shape=jax.ShapeDtypeStruct((B, 1, 1), jnp.float32),
        grid=(B, num_s),
        in_specs=in_specs,
        out_specs=pl.BlockSpec((None, 1, 1), lambda b, s: (b, 0, 0)),
        compiler_params=pltpu.CompilerParams(
            dimension_semantics=("parallel", "arbitrary")),
    )(*inputs)

    loss = per_batch.reshape(B)

    # mmcv @weighted_loss reduction semantics (weight=None, avg_factor=None)
    if reduction == 'mean':
        loss = jnp.mean(loss)
    elif reduction == 'sum':
        loss = jnp.sum(loss)
    # 'none' / None: keep per-batch vector
    return loss_weight * loss


class LikelihoodLossPallas:
    """JAX/Pallas port of mmhuman3d LikelihoodLoss (no learnable parameters)."""

    def __init__(self, reduction='mean', loss_weight=1.0):
        assert reduction in (None, 'none', 'mean', 'sum')
        self.reduction = reduction
        self.loss_weight = loss_weight

    def __call__(self, pred, target, clutter_scores, mask, pixel_orient_weights,
                 n_orient, pixel_var, options,
                 loss_weight_override=None, reduction_override=None, spatial_tile=None):
        assert reduction_override in (None, 'none', 'mean', 'sum')
        reduction = reduction_override if reduction_override else self.reduction
        loss_weight = (loss_weight_override
                       if loss_weight_override is not None else self.loss_weight)
        return likelihood_loss_pallas(
            pred, target, clutter_scores, mask, pixel_orient_weights,
            n_orient, pixel_var, options,
            reduction=reduction, loss_weight=loss_weight, spatial_tile=spatial_tile)


# ----------------------------- reference (pure JAX, for verification) -----------------------------

def _ref_loss(proj, pred, clu, mask, pow_, n_orient, disable_occ=False, loss_weight=1.0):
    B, C, H, W = proj.shape
    F = C // n_orient
    p = proj.astype(jnp.float32).reshape(B, n_orient, F, H, W)
    norm = jnp.sqrt(jnp.sum(p * p, axis=2, keepdims=True))
    p = p / jnp.maximum(norm, 1e-12)
    obj = jnp.sum(p * pred.astype(jnp.float32)[:, None], axis=2)          # (B, O, H, W)
    if n_orient > 1:
        obj = jnp.sum(pow_.astype(jnp.float32) * obj, axis=1)             # (B, H, W)
    else:
        obj = obj[:, 0]
    clu = clu.astype(jnp.float32)
    if disable_occ:
        m = mask.astype(jnp.float32)
        heat = obj * m + clu * (1.0 - m)
        per_b = 1.0 - jnp.mean(heat, axis=(1, 2))
    else:
        a = jnp.clip(0.5 * obj + 0.5, 1e-8, 1.0)
        b = 0.5 * clu + 0.5
        ua, ub = a * 10.0, b * 10.0
        mx = jnp.maximum(ua, ub)
        ea, eb = jnp.exp(ua - mx), jnp.exp(ub - mx)
        soft_max = (a * ea + b * eb) / (ea + eb)
        per_b = jnp.mean(1.0 - soft_max, axis=(1, 2))
    return loss_weight * jnp.mean(per_b)


class _Options:
    def __init__(self, disable_occ=False, bUseVariance=True):
        self.disable_occ = disable_occ
        self.bUseVariance = bUseVariance  # forced False inside the loss anyway


# ----------------------------- main -----------------------------

if __name__ == "__main__":
    key = jax.random.PRNGKey(0)

    # ---- Config 1: soft-max branch (disable_occ=False), auto tiling (single full-S tile).
    B, n_orient, F, H, W = 2, 4, 32, 16, 16
    C = n_orient * F
    k1, k2, k3, k4, k5, k6 = jax.random.split(key, 6)
    projected_map = jax.random.normal(k1, (B, C, H, W), dtype=jnp.float32)
    predicted_map = jax.random.uniform(k2, (B, F, H, W), jnp.float32, -1.0, 1.0)
    clutter_scores = jax.random.uniform(k3, (B, H, W), jnp.float32, -1.0, 1.0)
    mask = (jax.random.uniform(k4, (B, H, W)) > 0.5).astype(jnp.float32)
    pixel_orient_weights = jax.nn.softmax(
        jax.random.normal(k5, (B, n_orient, H, W), dtype=jnp.float32), axis=1)

    options = _Options(disable_occ=False)
    loss_mod = LikelihoodLossPallas(reduction='mean', loss_weight=1.0)

    out1 = jax.block_until_ready(
        loss_mod(projected_map, predicted_map, clutter_scores, mask,
                 pixel_orient_weights, n_orient, None, options))
    ref1 = jax.block_until_ready(
        _ref_loss(projected_map, predicted_map, clutter_scores, mask,
                  pixel_orient_weights, n_orient, disable_occ=False))
    assert jnp.isfinite(out1), "non-finite loss (config 1)"
    # approx EUP reciprocal in the kernel -> loose-ish tolerance
    assert abs(float(out1) - float(ref1)) < 5e-3, (float(out1), float(ref1))

    # ---- Config 1b: same data, forced spatial tiling (tile=128 -> grid (B, 2)) to exercise
    #      the accumulator init/accumulate/finalize path.
    out1b = jax.block_until_ready(
        likelihood_loss_pallas(projected_map, predicted_map, clutter_scores, mask,
                               pixel_orient_weights, n_orient, None, options,
                               spatial_tile=128))
    assert abs(float(out1b) - float(ref1)) < 5e-3, (float(out1b), float(ref1))
    assert abs(float(out1b) - float(out1)) < 5e-3, (float(out1b), float(out1))

    # ---- Config 2: disable_occ=True branch, non-divisible spatial extent (S=400, tile=256
    #      -> partial tail tile) to exercise in-kernel tail masking. Exact math -> tight tol.
    B2, O2, F2, H2, W2 = 2, 2, 16, 20, 20
    C2 = O2 * F2
    j1, j2, j3, j4, j5 = jax.random.split(k6, 5)
    proj2 = jax.random.normal(j1, (B2, C2, H2, W2), dtype=jnp.float32)
    pred2 = jax.random.uniform(j2, (B2, F2, H2, W2), jnp.float32, -1.0, 1.0)
    clu2 = jax.random.uniform(j3, (B2, H2, W2), jnp.float32, -1.0, 1.0)
    mask2 = (jax.random.uniform(j4, (B2, H2, W2)) > 0.5).astype(jnp.float32)
    pow2 = jax.nn.softmax(jax.random.normal(j5, (B2, O2, H2, W2), dtype=jnp.float32), axis=1)

    options2 = _Options(disable_occ=True)
    out2 = jax.block_until_ready(
        likelihood_loss_pallas(proj2, pred2, clu2, mask2, pow2, O2, None, options2,
                               reduction='mean', spatial_tile=256))
    ref2 = jax.block_until_ready(
        _ref_loss(proj2, pred2, clu2, mask2, pow2, O2, disable_occ=True))
    assert jnp.isfinite(out2), "non-finite loss (config 2)"
    assert abs(float(out2) - float(ref2)) < 1e-4, (float(out2), float(ref2))

    print("KERNEL_OK")
</pallas_src>

<mosaic_0001>
module attributes {stable_mosaic.version = 11 : i64} {
  func.func @_likelihood_kernel(%arg0: i32, %arg1: i32, %arg2: memref<1x4x32x256xf32, #tpu.memory_space<vmem>>, %arg3: memref<1x32x256xf32, #tpu.memory_space<vmem>>, %arg4: memref<1x4x256xf32, #tpu.memory_space<vmem>>, %arg5: memref<1x1x256xf32, #tpu.memory_space<vmem>>, %arg6: memref<1x1x1xf32, #tpu.memory_space<vmem>>) attributes {dimension_semantics = [#tpu.dimension_semantics<parallel>, #tpu.dimension_semantics<arbitrary>], iteration_bounds = array<i64: 2, 1>, scalar_prefetch = 0 : i64, scratch_operands = 0 : i64, tpu.core_type = #tpu.core_type<tc>, window_params = [{transform_indices = @transform_0, window_bounds = array<i64: 1, 4, 32, 256>}, {transform_indices = @transform_1, window_bounds = array<i64: 1, 32, 256>}, {transform_indices = @transform_2, window_bounds = array<i64: 1, 4, 256>}, {transform_indices = @transform_3, window_bounds = array<i64: 1, 1, 256>}, {transform_indices = @transform_4, window_bounds = array<i64: 1, 1, 1>}]} {
    %c0_i32 = arith.constant 0 : i32
    %0 = arith.cmpi eq, %arg1, %c0_i32 : i32
    %1 = arith.extui %0 : i1 to i32
    %c0_i32_0 = arith.constant 0 : i32
    %2 = arith.cmpi ne, %1, %c0_i32_0 : i32
    scf.if %2 {
      %cst_59 = arith.constant 0.000000e+00 : f32
      %111 = vector.broadcast %cst_59 : f32 to vector<1x1xf32>
      %c0_60 = arith.constant 0 : index
      %c0_61 = arith.constant 0 : index
      %c0_62 = arith.constant 0 : index
      %112 = vector.load %arg6[%c0_60, %c0_61, %c0_62] : memref<1x1x1xf32, #tpu.memory_space<vmem>>, vector<1x1x1xf32>
      %113 = vector.shape_cast %112 : vector<1x1x1xf32> to vector<1x1xf32>
      %114 = vector.shape_cast %111 : vector<1x1xf32> to vector<1x1x1xf32>
      tpu.vector_store %arg6[%c0_60, %c0_61, %c0_62], %114 {strides = array<i32>} : memref<1x1x1xf32, #tpu.memory_space<vmem>>, vector<1x1x1xf32>,
    } else {
    }
    %c0 = arith.constant 0 : index
    %c0_1 = arith.constant 0 : index
    %c0_2 = arith.constant 0 : index
    %3 = vector.load %arg3[%c0, %c0_1, %c0_2] : memref<1x32x256xf32, #tpu.memory_space<vmem>>, vector<1x32x256xf32>
    %4 = vector.shape_cast %3 : vector<1x32x256xf32> to vector<32x256xf32>
    %c0_3 = arith.constant 0 : index
    %c0_4 = arith.constant 0 : index
    %c0_5 = arith.constant 0 : index
    %c0_6 = arith.constant 0 : index
    %5 = vector.load %arg2[%c0_3, %c0_4, %c0_5, %c0_6] : memref<1x4x32x256xf32, #tpu.memory_space<vmem>>, vector<1x1x32x256xf32>
    %6 = vector.shape_cast %5 : vector<1x1x32x256xf32> to vector<32x256xf32>
    %7 = arith.mulf %6, %6 : vector<32x256xf32>
    %cst = arith.constant dense<0.000000e+00> : vector<256xf32>
    %8 = vector.multi_reduction <add>, %7, %cst [0] : vector<32x256xf32> to vector<256xf32>
    %9 = vector.shape_cast %8 : vector<256xf32> to vector<1x256xf32>
    %10 = arith.mulf %6, %4 : vector<32x256xf32>
    %cst_7 = arith.constant dense<0.000000e+00> : vector<256xf32>
    %11 = vector.multi_reduction <add>, %10, %cst_7 [0] : vector<32x256xf32> to vector<256xf32>
    %12 = vector.shape_cast %11 : vector<256xf32> to vector<1x256xf32>
    %cst_8 = arith.constant 1.000000e-24 : f32
    %13 = vector.broadcast %cst_8 : f32 to vector<1x256xf32>
    %14 = arith.maximumf %9, %13 : vector<1x256xf32>
    %15 = math.rsqrt %14 : vector<1x256xf32>
    %16 = arith.mulf %12, %15 : vector<1x256xf32>
    %c0_9 = arith.constant 0 : index
    %c0_10 = arith.constant 0 : index
    %c0_11 = arith.constant 0 : index
    %17 = vector.load %arg4[%c0_9, %c0_10, %c0_11] : memref<1x4x256xf32, #tpu.memory_space<vmem>>, vector<1x1x256xf32>
    %18 = vector.shape_cast %17 : vector<1x1x256xf32> to vector<1x256xf32>
    %19 = arith.mulf %16, %18 : vector<1x256xf32>
    %c0_12 = arith.constant 0 : index
    %c1 = arith.constant 1 : index
    %c0_13 = arith.constant 0 : index
    %c0_14 = arith.constant 0 : index
    %20 = vector.load %arg2[%c0_12, %c1, %c0_13, %c0_14] : memref<1x4x32x256xf32, #tpu.memory_space<vmem>>, vector<1x1x32x256xf32>
    %21 = vector.shape_cast %20 : vector<1x1x32x256xf32> to vector<32x256xf32>
    %22 = arith.mulf %21, %21 : vector<32x256xf32>
    %cst_15 = arith.constant dense<0.000000e+00> : vector<256xf32>
    %23 = vector.multi_reduction <add>, %22, %cst_15 [0] : vector<32x256xf32> to vector<256xf32>
    %24 = vector.shape_cast %23 : vector<256xf32> to vector<1x256xf32>
    %25 = arith.mulf %21, %4 : vector<32x256xf32>
    %cst_16 = arith.constant dense<0.000000e+00> : vector<256xf32>
    %26 = vector.multi_reduction <add>, %25, %cst_16 [0] : vector<32x256xf32> to vector<256xf32>
    %27 = vector.shape_cast %26 : vector<256xf32> to vector<1x256xf32>
    %cst_17 = arith.constant 1.000000e-24 : f32
    %28 = vector.broadcast %cst_17 : f32 to vector<1x256xf32>
    %29 = arith.maximumf %24, %28 : vector<1x256xf32>
    %30 = math.rsqrt %29 : vector<1x256xf32>
    %31 = arith.mulf %27, %30 : vector<1x256xf32>
    %c0_18 = arith.constant 0 : index
    %c1_19 = arith.constant 1 : index
    %c0_20 = arith.constant 0 : index
    %32 = vector.load %arg4[%c0_18, %c1_19, %c0_20] : memref<1x4x256xf32, #tpu.memory_space<vmem>>, vector<1x1x256xf32>
    %33 = vector.shape_cast %32 : vector<1x1x256xf32> to vector<1x256xf32>
    %34 = arith.mulf %31, %33 : vector<1x256xf32>
    %35 = arith.addf %19, %34 : vector<1x256xf32>
    %c0_21 = arith.constant 0 : index
    %c2 = arith.constant 2 : index
    %c0_22 = arith.constant 0 : index
    %c0_23 = arith.constant 0 : index
    %36 = vector.load %arg2[%c0_21, %c2, %c0_22, %c0_23] : memref<1x4x32x256xf32, #tpu.memory_space<vmem>>, vector<1x1x32x256xf32>
    %37 = vector.shape_cast %36 : vector<1x1x32x256xf32> to vector<32x256xf32>
    %38 = arith.mulf %37, %37 : vector<32x256xf32>
    %cst_24 = arith.constant dense<0.000000e+00> : vector<256xf32>
    %39 = vector.multi_reduction <add>, %38, %cst_24 [0] : vector<32x256xf32> to vector<256xf32>
    %40 = vector.shape_cast %39 : vector<256xf32> to vector<1x256xf32>
    %41 = arith.mulf %37, %4 : vector<32x256xf32>
    %cst_25 = arith.constant dense<0.000000e+00> : vector<256xf32>
    %42 = vector.multi_reduction <add>, %41, %cst_25 [0] : vector<32x256xf32> to vector<256xf32>
    %43 = vector.shape_cast %42 : vector<256xf32> to vector<1x256xf32>
    %cst_26 = arith.constant 1.000000e-24 : f32
    %44 = vector.broadcast %cst_26 : f32 to vector<1x256xf32>
    %45 = arith.maximumf %40, %44 : vector<1x256xf32>
    %46 = math.rsqrt %45 : vector<1x256xf32>
    %47 = arith.mulf %43, %46 : vector<1x256xf32>
    %c0_27 = arith.constant 0 : index
    %c2_28 = arith.constant 2 : index
    %c0_29 = arith.constant 0 : index
    %48 = vector.load %arg4[%c0_27, %c2_28, %c0_29] : memref<1x4x256xf32, #tpu.memory_space<vmem>>, vector<1x1x256xf32>
    %49 = vector.shape_cast %48 : vector<1x1x256xf32> to vector<1x256xf32>
    %50 = arith.mulf %47, %49 : vector<1x256xf32>
    %51 = arith.addf %35, %50 : vector<1x256xf32>
    %c0_30 = arith.constant 0 : index
    %c3 = arith.constant 3 : index
    %c0_31 = arith.constant 0 : index
    %c0_32 = arith.constant 0 : index
    %52 = vector.load %arg2[%c0_30, %c3, %c0_31, %c0_32] : memref<1x4x32x256xf32, #tpu.memory_space<vmem>>, vector<1x1x32x256xf32>
    %53 = vector.shape_cast %52 : vector<1x1x32x256xf32> to vector<32x256xf32>
    %54 = arith.mulf %53, %53 : vector<32x256xf32>
    %cst_33 = arith.constant dense<0.000000e+00> : vector<256xf32>
    %55 = vector.multi_reduction <add>, %54, %cst_33 [0] : vector<32x256xf32> to vector<256xf32>
    %56 = vector.shape_cast %55 : vector<256xf32> to vector<1x256xf32>
    %57 = arith.mulf %53, %4 : vector<32x256xf32>
    %cst_34 = arith.constant dense<0.000000e+00> : vector<256xf32>
    %58 = vector.multi_reduction <add>, %57, %cst_34 [0] : vector<32x256xf32> to vector<256xf32>
    %59 = vector.shape_cast %58 : vector<256xf32> to vector<1x256xf32>
    %cst_35 = arith.constant 1.000000e-24 : f32
    %60 = vector.broadcast %cst_35 : f32 to vector<1x256xf32>
    %61 = arith.maximumf %56, %60 : vector<1x256xf32>
    %62 = math.rsqrt %61 : vector<1x256xf32>
    %63 = arith.mulf %59, %62 : vector<1x256xf32>
    %c0_36 = arith.constant 0 : index
    %c3_37 = arith.constant 3 : index
    %c0_38 = arith.constant 0 : index
    %64 = vector.load %arg4[%c0_36, %c3_37, %c0_38] : memref<1x4x256xf32, #tpu.memory_space<vmem>>, vector<1x1x256xf32>
    %65 = vector.shape_cast %64 : vector<1x1x256xf32> to vector<1x256xf32>
    %66 = arith.mulf %63, %65 : vector<1x256xf32>
    %67 = arith.addf %51, %66 : vector<1x256xf32>
    %c0_39 = arith.constant 0 : index
    %c0_40 = arith.constant 0 : index
    %c0_41 = arith.constant 0 : index
    %68 = vector.load %arg5[%c0_39, %c0_40, %c0_41] : memref<1x1x256xf32, #tpu.memory_space<vmem>>, vector<1x1x256xf32>
    %69 = vector.shape_cast %68 : vector<1x1x256xf32> to vector<1x256xf32>
    %cst_42 = arith.constant 5.000000e-01 : f32
    %70 = vector.broadcast %cst_42 : f32 to vector<1x256xf32>
    %71 = arith.mulf %70, %67 : vector<1x256xf32>
    %cst_43 = arith.constant 5.000000e-01 : f32
    %72 = vector.broadcast %cst_43 : f32 to vector<1x256xf32>
    %73 = arith.addf %71, %72 : vector<1x256xf32>
    %cst_44 = arith.constant 9.99999993E-9 : f32
    %cst_45 = arith.constant 1.000000e+00 : f32
    %74 = vector.broadcast %cst_44 : f32 to vector<1x256xf32>
    %75 = arith.maximumf %74, %73 : vector<1x256xf32>
    %76 = vector.broadcast %cst_45 : f32 to vector<1x256xf32>
    %77 = arith.minimumf %76, %75 : vector<1x256xf32>
    %cst_46 = arith.constant 5.000000e-01 : f32
    %78 = vector.broadcast %cst_46 : f32 to vector<1x256xf32>
    %79 = arith.mulf %78, %69 : vector<1x256xf32>
    %cst_47 = arith.constant 5.000000e-01 : f32
    %80 = vector.broadcast %cst_47 : f32 to vector<1x256xf32>
    %81 = arith.addf %79, %80 : vector<1x256xf32>
    %cst_48 = arith.constant 1.000000e+01 : f32
    %82 = vector.broadcast %cst_48 : f32 to vector<1x256xf32>
    %83 = arith.mulf %77, %82 : vector<1x256xf32>
    %cst_49 = arith.constant 1.000000e+01 : f32
    %84 = vector.broadcast %cst_49 : f32 to vector<1x256xf32>
    %85 = arith.mulf %81, %84 : vector<1x256xf32>
    %86 = arith.maximumf %83, %85 : vector<1x256xf32>
    %87 = arith.subf %83, %86 : vector<1x256xf32>
    %88 = math.exp %87 : vector<1x256xf32>
    %89 = arith.subf %85, %86 : vector<1x256xf32>
    %90 = math.exp %89 : vector<1x256xf32>
    %91 = arith.mulf %77, %88 : vector<1x256xf32>
    %92 = arith.mulf %81, %90 : vector<1x256xf32>
    %93 = arith.addf %91, %92 : vector<1x256xf32>
    %94 = arith.addf %88, %90 : vector<1x256xf32>
    %95 = tpu.reciprocal %94 {approx = true} : vector<1x256xf32> -> vector<1x256xf32>
    %96 = arith.mulf %93, %95 : vector<1x256xf32>
    %c0_50 = arith.constant 0 : index
    %c0_51 = arith.constant 0 : index
    %c0_52 = arith.constant 0 : index
    %97 = vector.load %arg6[%c0_50, %c0_51, %c0_52] : memref<1x1x1xf32, #tpu.memory_space<vmem>>, vector<1x1x1xf32>
    %98 = vector.shape_cast %97 : vector<1x1x1xf32> to vector<1x1xf32>
    %99 = vector.shape_cast %96 : vector<1x256xf32> to vector<1x1x256xf32>
    %cst_53 = arith.constant dense<0.000000e+00> : vector<1xf32>
    %100 = vector.multi_reduction <add>, %99, %cst_53 [1, 2] : vector<1x1x256xf32> to vector<1xf32>
    %101 = vector.shape_cast %100 : vector<1xf32> to vector<1x1x1xf32>
    %102 = vector.extract %101[0, 0, 0] : f32 from vector<1x1x1xf32>
    %103 = vector.broadcast %102 : f32 to vector<1x1xf32>
    %104 = arith.addf %98, %103 : vector<1x1xf32>
    %c0_54 = arith.constant 0 : index
    %c0_55 = arith.constant 0 : index
    %c0_56 = arith.constant 0 : index
    %105 = vector.load %arg6[%c0_54, %c0_55, %c0_56] : memref<1x1x1xf32, #tpu.memory_space<vmem>>, vector<1x1x1xf32>
    %106 = vector.shape_cast %105 : vector<1x1x1xf32> to vector<1x1xf32>
    %107 = vector.shape_cast %104 : vector<1x1xf32> to vector<1x1x1xf32>
    tpu.vector_store %arg6[%c0_54, %c0_55, %c0_56], %107 {strides = array<i32>} : memref<1x1x1xf32, #tpu.memory_space<vmem>>, vector<1x1x1xf32>,
    %c0_i32_57 = arith.constant 0 : i32
    %108 = arith.cmpi eq, %arg1, %c0_i32_57 : i32
    %109 = arith.extui %108 : i1 to i32
    %c0_i32_58 = arith.constant 0 : i32
    %110 = arith.cmpi ne, %109, %c0_i32_58 : i32
    scf.if %110 {
      %c0_59 = arith.constant 0 : index
      %c0_60 = arith.constant 0 : index
      %c0_61 = arith.constant 0 : index
      %111 = vector.load %arg6[%c0_59, %c0_60, %c0_61] : memref<1x1x1xf32, #tpu.memory_space<vmem>>, vector<1x1x1xf32>
      %112 = vector.shape_cast %111 : vector<1x1x1xf32> to vector<1x1xf32>
      %cst_62 = arith.constant 3.906250e-03 : f32
      %113 = vector.broadcast %cst_62 : f32 to vector<1x1xf32>
      %114 = arith.mulf %112, %113 : vector<1x1xf32>
      %cst_63 = arith.constant 1.000000e+00 : f32
      %115 = vector.broadcast %cst_63 : f32 to vector<1x1xf32>
      %116 = arith.subf %115, %114 : vector<1x1xf32>
      %c0_64 = arith.constant 0 : index
      %c0_65 = arith.constant 0 : index
      %c0_66 = arith.constant 0 : index
      %117 = vector.load %arg6[%c0_64, %c0_65, %c0_66] : memref<1x1x1xf32, #tpu.memory_space<vmem>>, vector<1x1x1xf32>
      %118 = vector.shape_cast %117 : vector<1x1x1xf32> to vector<1x1xf32>
      %119 = vector.shape_cast %116 : vector<1x1xf32> to vector<1x1x1xf32>
      tpu.vector_store %arg6[%c0_64, %c0_65, %c0_66], %119 {strides = array<i32>} : memref<1x1x1xf32, #tpu.memory_space<vmem>>, vector<1x1x1xf32>,
    } else {
    }
    return
  }
  func.func @transform_0(%arg0: i32, %arg1: i32) -> (i32, i32, i32, i32) {
    %c0_i32 = arith.constant 0 : i32
    %c0_i32_0 = arith.constant 0 : i32
    %c0_i32_1 = arith.constant 0 : i32
    return %arg0, %c0_i32, %c0_i32_0, %arg1 : i32, i32, i32, i32
  }
  func.func @transform_1(%arg0: i32, %arg1: i32) -> (i32, i32, i32) {
    %c0_i32 = arith.constant 0 : i32
    %c0_i32_0 = arith.constant 0 : i32
    return %arg0, %c0_i32, %arg1 : i32, i32, i32
  }
  func.func @transform_2(%arg0: i32, %arg1: i32) -> (i32, i32, i32) {
    %c0_i32 = arith.constant 0 : i32
    %c0_i32_0 = arith.constant 0 : i32
    return %arg0, %c0_i32, %arg1 : i32, i32, i32
  }
  func.func @transform_3(%arg0: i32, %arg1: i32) -> (i32, i32, i32) {
    %c0_i32 = arith.constant 0 : i32
    %c0_i32_0 = arith.constant 0 : i32
    return %arg0, %c0_i32, %arg1 : i32, i32, i32
  }
  func.func @transform_4(%arg0: i32, %arg1: i32) -> (i32, i32, i32) {
    %c0_i32 = arith.constant 0 : i32
    %c0_i32_0 = arith.constant 0 : i32
    %c0_i32_1 = arith.constant 0 : i32
    return %arg0, %c0_i32, %c0_i32_0 : i32, i32, i32
  }
}

</mosaic_0001>

<llo_original>
// kernel: tpu_custom_call.1
$region0: #{tpu_custom_call.1}
  #allocation0 [shape = 'u32[]', space=smem, size = 0x4, offset = 0x4, fixed_abs, tag = 'smem constant byte address 0x4 - core index']
  #allocation1 [shape = 'u32[144,128]{1,0:T(1,128)}', space=vmem, size = 0x12000, scoped, tag = 'internal scratch']
  %s0 = inlined_call_operand.hbm [shape: f32[2,4,32,256], index: 0, kind: input, shape index: {}]
  %s1 = inlined_call_operand.hbm [shape: f32[2,32,256], index: 1, kind: input, shape index: {}]
  %s2 = inlined_call_operand.hbm [shape: f32[2,4,256], index: 2, kind: input, shape index: {}]
  %s3 = inlined_call_operand.vmem [shape: f32[2,1,256], index: 3, kind: input, shape index: {}]
  %s4 = inlined_call_operand.vmem [shape: f32[2,1,1], index: 4, kind: output, shape index: {}]
  %s5 = sld [smem:[#allocation0]]
  $region69: #{tpu_custom_call.1} parent=0
    _
  %s7 = ssub.s32 1, %s5
  %s8 = scalar_select 0, %s7, %s5
  $region1: #{tpu_custom_call.1} parent=0
    #allocation2 [shape = 'u8[262144]{0}', space=vmem, size = 0x40000, scoped, tag = 'input window, operand 0']
    #allocation3 [shape = 's32[2]{0}', space=sflag, size = 0x8, scoped, tag = 'scoped memory for tpu_custom_call.1']
    #allocation4 [shape = 'u8[65536]{0}', space=vmem, size = 0x10000, scoped, tag = 'input window, operand 1']
    #allocation5 [shape = 's32[2]{0}', space=sflag, size = 0x8, scoped, tag = 'scoped memory for tpu_custom_call.1']
    #allocation6 [shape = 'u8[8192]{0}', space=vmem, size = 0x2000, scoped, tag = 'input window, operand 2']
    %9 = vsyncpa [#allocation3], 0
    %s10 = scalar_lea.sflag [#allocation3], 1
    %11 = vsyncpa %s10, 0
    %12 = vsyncpa [#allocation5], 0
    %s13 = scalar_lea.sflag [#allocation5], 1
    %14 = vsyncpa %s13, 0
    loop: start=0, step=1, limit=4
    $region2: #{tpu_custom_call.1} parent=1 // loop_pre_header
      _
    $region3: #{tpu_custom_call.1} parent=1 // loop_header
      %s16 = sphi 0, %s20
      %p17 = scmp.ge.s32.totalorder %s16, 4
      %s23 = sphi 0, %s35
      %s24 = sphi 0, %s31
      %s25 = sphi 0, %s23
      %s26 = sphi 0, %s24
      %s27 = sphi 0, %s25
      %s28 = sphi 0, %s26
      %s40 = sphi 0, %s42
      %s43 = sphi 0, %s40
      %s44 = sphi 0, %s43
      %s60 = sphi 0, %s44
      %s68 = sphi 0, %s70
      %s71 = sphi 0, %s68
      %s72 = sphi 0, %s71
      %s88 = sphi 0, %s72
      %s96 = sphi 0, %s98
      %s99 = sphi 0, %s96
      %s100 = sphi 0, %s99
      %s116 = sphi 0, %s100
      %s124 = sphi 0, %s126
      %s127 = sphi 0, %s124
      %s128 = sphi 0, %s127
      %s144 = sphi 0, %s128
      %s150 = sphi 0, %s152
      %s153 = sphi 0, %s150
      %s154 = sphi 0, %s153
      %s170 = sphi 0, %s154
    $region4: #{tpu_custom_call.1} parent=1 // loop_header_branch
      %19 = sbr.rel (%p17) target = $region8
    $region5: #{tpu_custom_call.1} parent=1 // loop_body
      %s21 = ssub.s32 %s16, 1
      %s22 = ssub.s32 %s16, 2
      %s29 = sadd.s32 1, %s24
      %p30 = scmp.ge.s32.totalorder %s29, 1
      %s31 = scalar_select %p30, 0, %s29
      %s32 = sadd.s32 1, %s23
      %s33 = scalar_select %p30, %s32, %s23
      %p34 = scmp.ge.s32.totalorder %s33, 2
      %s35 = scalar_select %p34, 0, %s33
      %s36 = ssub.s32 %s23, %s35
      %s37 = ssub.s32 %s24, %s31
      %s38 = sor.u32 %s36, %s37
      %p39 = scmp.eq.s32.totalorder %s38, 0
      %s41 = sadd.s32 %s40, 1
      %s42 = scalar_select %p39, %s40, %s41
      %p45 = pneg %p39
      %p46 = scmp.eq.s32.totalorder %s16, 1
      %p47 = por %p45, %p46
      %p48 = scmp.ne.s32.totalorder %s40, %s43
      %p49 = scmp.eq.s32.totalorder %s16, 0
      %p50 = por %p48, %p49
      %p51 = scmp.ne.s32.totalorder %s40, %s43
      %p52 = scmp.eq.s32.totalorder %s21, 1
      %p53 = por %p51, %p52
      %p54 = scmp.ne.s32.totalorder %s43, %s44
      %p55 = scmp.eq.s32.totalorder %s21, 0
      %p56 = por %p54, %p55
      %p57 = scmp.ne.s32.totalorder %s43, %s44
      %p58 = scmp.eq.s32.totalorder %s22, 1
      %p59 = por %p57, %p58
      %p61 = scmp.ne.s32.totalorder %s44, %s60
      %p62 = scmp.eq.s32.totalorder %s22, 0
      %p63 = por %p61, %p62
      %s64 = ssub.s32 %s23, %s35
      %s65 = ssub.s32 %s24, %s31
      %s66 = sor.u32 %s64, %s65
      %p67 = scmp.eq.s32.totalorder %s66, 0
      %s69 = sadd.s32 %s68, 1
      %s70 = scalar_select %p67, %s68, %s69
      %p73 = pneg %p67
      %p74 = scmp.eq.s32.totalorder %s16, 1
      %p75 = por %p73, %p74
      %p76 = scmp.ne.s32.totalorder %s68, %s71
      %p77 = scmp.eq.s32.totalorder %s16, 0
      %p78 = por %p76, %p77
      %p79 = scmp.ne.s32.totalorder %s68, %s71
      %p80 = scmp.eq.s32.totalorder %s21, 1
      %p81 = por %p79, %p80
      %p82 = scmp.ne.s32.totalorder %s71, %s72
      %p83 = scmp.eq.s32.totalorder %s21, 0
      %p84 = por %p82, %p83
      %p85 = scmp.ne.s32.totalorder %s71, %s72
      %p86 = scmp.eq.s32.totalorder %s22, 1
      %p87 = por %p85, %p86
      %p89 = scmp.ne.s32.totalorder %s72, %s88
      %p90 = scmp.eq.s32.totalorder %s22, 0
      %p91 = por %p89, %p90
      %s92 = ssub.s32 %s23, %s35
      %s93 = ssub.s32 %s24, %s31
      %s94 = sor.u32 %s92, %s93
      %p95 = scmp.eq.s32.totalorder %s94, 0
      %s97 = sadd.s32 %s96, 1
      %s98 = scalar_select %p95, %s96, %s97
      %p101 = pneg %p95
      %p102 = scmp.eq.s32.totalorder %s16, 1
      %p103 = por %p101, %p102
      %p104 = scmp.ne.s32.totalorder %s96, %s99
      %p105 = scmp.eq.s32.totalorder %s16, 0
      %p106 = por %p104, %p105
      %p107 = scmp.ne.s32.totalorder %s96, %s99
      %p108 = scmp.eq.s32.totalorder %s21, 1
      %p109 = por %p107, %p108
      %p110 = scmp.ne.s32.totalorder %s99, %s100
      %p111 = scmp.eq.s32.totalorder %s21, 0
      %p112 = por %p110, %p111
      %p113 = scmp.ne.s32.totalorder %s99, %s100
      %p114 = scmp.eq.s32.totalorder %s22, 1
      %p115 = por %p113, %p114
      %p117 = scmp.ne.s32.totalorder %s100, %s116
      %p118 = scmp.eq.s32.totalorder %s22, 0
      %p119 = por %p117, %p118
      %s120 = ssub.s32 %s23, %s35
      %s121 = ssub.s32 %s24, %s31
      %s122 = sor.u32 %s120, %s121
      %p123 = scmp.eq.s32.totalorder %s122, 0
      %s125 = sadd.s32 %s124, 1
      %s126 = scalar_select %p123, %s124, %s125
      %p129 = pneg %p123
      %p130 = scmp.eq.s32.totalorder %s16, 1
      %p131 = por %p129, %p130
      %p132 = scmp.ne.s32.totalorder %s124, %s127
      %p133 = scmp.eq.s32.totalorder %s16, 0
      %p134 = por %p132, %p133
      %p135 = scmp.ne.s32.totalorder %s124, %s127
      %p136 = scmp.eq.s32.totalorder %s21, 1
      %p137 = por %p135, %p136
      %p138 = scmp.ne.s32.totalorder %s127, %s128
      %p139 = scmp.eq.s32.totalorder %s21, 0
      %p140 = por %p138, %p139
      %p141 = scmp.ne.s32.totalorder %s127, %s128
      %p142 = scmp.eq.s32.totalorder %s22, 1
      %p143 = por %p141, %p142
      %p145 = scmp.ne.s32.totalorder %s128, %s144
      %p146 = scmp.eq.s32.totalorder %s22, 0
      %p147 = por %p145, %p146
      %s148 = ssub.s32 %s23, %s35
      %p149 = scmp.eq.s32.totalorder %s148, 0
      %s151 = sadd.s32 %s150, 1
      %s152 = scalar_select %p149, %s150, %s151
      %p155 = pneg %p149
      %p156 = scmp.eq.s32.totalorder %s16, 1
      %p157 = por %p155, %p156
      %p158 = scmp.ne.s32.totalorder %s150, %s153
      %p159 = scmp.eq.s32.totalorder %s16, 0
      %p160 = por %p158, %p159
      %p161 = scmp.ne.s32.totalorder %s150, %s153
      %p162 = scmp.eq.s32.totalorder %s21, 1
      %p163 = por %p161, %p162
      %p164 = scmp.ne.s32.totalorder %s153, %s154
      %p165 = scmp.eq.s32.totalorder %s21, 0
      %p166 = por %p164, %p165
      %p167 = scmp.ne.s32.totalorder %s153, %s154
      %p168 = scmp.eq.s32.totalorder %s22, 1
      %p169 = por %p167, %p168
      %p171 = scmp.ne.s32.totalorder %s154, %s170
      %p172 = scmp.eq.s32.totalorder %s22, 0
      %p173 = por %p171, %p172
      %p174 = scmp.le.s32.totalorder 1, %s16
      %p175 = scmp.lt.s32.totalorder %s16, 3
      %p176 = pnand %p174, %p175
      %p177 = pneg %p176
      // Predicated region
      $region9: #{tpu_custom_call.1} parent=5 // pred_check
        _
      $region10: #{tpu_custom_call.1} parent=5 // pred_check_branch
        %179 = sbr.rel (%p176) target = $region12
      $region11: #{tpu_custom_call.1} parent=5 // pred_region
        %s180 = ssub.s32 %s16, 1
      $region12: #{tpu_custom_call.1} parent=5 // pred_fallthru
        _
      %p181 = scmp.lt.s32.totalorder %s16, 2
      // Predicated region
      $region13: #{tpu_custom_call.1} parent=5 // pred_check
        %p182 = pneg %p181
      $region14: #{tpu_custom_call.1} parent=5 // pred_check_branch
        %184 = sbr.rel (%p182) target = $region16
      $region15: #{tpu_custom_call.1} parent=5 // pred_region
        // Predicated region
        $region17: #{tpu_custom_call.1} parent=15 // pred_check
          %p185 = pneg %p50
        $region18: #{tpu_custom_call.1} parent=15 // pred_check_branch
          %187 = sbr.rel (%p185) target = $region20
        $region19: #{tpu_custom_call.1} parent=15 // pred_region
          %s188 = sand.u32 %s40, 1
          %s189 = scalar_lea.sflag [#allocation3], %s188
          %s190 = sand.u32 %s40, 1
          %s191 = smul.addr %s190, 256
          %s192 = scalar_lea.vmem [#allocation2], %s191
          %s193 = smul.u32 2, %s24
          %s195 = ssub.s32 4096, 4096
          %196 = vsyncadd %s189, %s195
          %s197 = smul.addr %s23, 32
          %s198 = sadd.s32 %s193, %s197
          %s199 = smul.addr %s198, 128
          %s200 = scalar_lea.hbm %s0, %s199
          %s201 = sshll.u32 %s192, 4
          %s202 = int_to_ptr.vmem [resolvable:$true] %s201
          %207 = dma.hbm_to_vmem [thread:$0]  %s200, 4096, %s202, %s189, 256, 256, 16
        $region20: #{tpu_custom_call.1} parent=15 // pred_fallthru
          _
        // Predicated region
        $region21: #{tpu_custom_call.1} parent=15 // pred_check
          %p208 = pneg %p78
        $region22: #{tpu_custom_call.1} parent=15 // pred_check_branch
          %210 = sbr.rel (%p208) target = $region24
        $region23: #{tpu_custom_call.1} parent=15 // pred_region
          %s211 = sand.u32 %s16, 1
          %s212 = scalar_lea.sflag [#allocation5], %s211
          %s213 = sand.u32 %s68, 1
          %s214 = smul.addr %s213, 64
          %s215 = scalar_lea.vmem [#allocation4], %s214
          %s216 = smul.u32 2, %s24
          %s218 = ssub.s32 1024, 1024
          %219 = vsyncadd %s212, %s218
          %s220 = smul.addr %s23, 8
          %s221 = sadd.s32 %s216, %s220
          %s222 = smul.addr %s221, 128
          %s223 = scalar_lea.hbm %s1, %s222
          %s224 = sshll.u32 %s215, 4
          %s225 = int_to_ptr.vmem [resolvable:$true] %s224
          %230 = dma.hbm_to_vmem [thread:$0]  %s223, 1024, %s225, %s212, 256, 256, 16
        $region24: #{tpu_custom_call.1} parent=15 // pred_fallthru
          _
        // Predicated region
        $region25: #{tpu_custom_call.1} parent=15 // pred_check
          %p231 = pneg %p106
        $region26: #{tpu_custom_call.1} parent=15 // pred_check_branch
          %233 = sbr.rel (%p231) target = $region28
        $region27: #{tpu_custom_call.1} parent=15 // pred_region
          %s234 = sand.u32 %s16, 1
          %s235 = scalar_lea.sflag [#allocation5], %s234
          %s236 = sand.u32 %s96, 1
          %s237 = smul.addr %s236, 8
          %s238 = scalar_lea.vmem [#allocation6], %s237
          %s239 = smul.u32 2, %s24
          %s241 = ssub.s32 128, 128
          %242 = vsyncadd %s235, %s241
          %s243 = smul.addr %s23, 2
          %s244 = sadd.s32 %s239, %s243
          %s245 = smul.addr %s244, 64
          %s246 = scalar_lea.hbm %s2, %s245
          %s248 = sshll.u32 %s238, 4
          %s249 = int_to_ptr.vmem [resolvable:$true] %s248
          %251 = dma.hbm_to_vmem [thread:$0]  %s246, 128, %s249, %s235
        $region28: #{tpu_custom_call.1} parent=15 // pred_fallthru
          _
        // Predicated region
        $region29: #{tpu_custom_call.1} parent=15 // pred_check
          %p252 = pneg %p134
        $region30: #{tpu_custom_call.1} parent=15 // pred_check_branch
          %254 = sbr.rel (%p252) target = $region32
        $region31: #{tpu_custom_call.1} parent=15 // pred_region
          %s255 = smul.u32 2, %s24
          %p256 = scmp.lt.s32.totalorder %s23, 1
          %s257 = scalar_select %p256, %s23, 1
          %p258 = scmp.lt.s32.totalorder %s255, 1
          %s259 = scalar_select %p258, %s255, 1
          %s260 = smul.addr %s257, 2
          %s261 = sadd.s32 %s259, %s260
          %s262 = scalar_lea.vmem %s3, %s261
          %s263 = smul.u32 2, %s24
        $region32: #{tpu_custom_call.1} parent=15 // pred_fallthru
          _
      $region16: #{tpu_custom_call.1} parent=5 // pred_fallthru
        _
      %p264 = scmp.le.s32.totalorder 1, %s16
      %p265 = scmp.lt.s32.totalorder %s16, 3
      %p266 = pnand %p264, %p265
      %p267 = pneg %p266
      // Predicated region
      $region33: #{tpu_custom_call.1} parent=5 // pred_check
        _
      $region34: #{tpu_custom_call.1} parent=5 // pred_check_branch
        %269 = sbr.rel (%p266) target = $region36
      $region35: #{tpu_custom_call.1} parent=5 // pred_region
        %s270 = ssub.s32 %s16, 1
        %s271 = sand.u32 %s43, 1
        %s272 = scalar_lea.sflag [#allocation3], %s271
        %s273 = sand.u32 %s43, 1
        %s274 = smul.addr %s273, 256
        %s275 = scalar_lea.vmem [#allocation2], %s274
        // Predicated region
        $region37: #{tpu_custom_call.1} parent=35 // pred_check
          %p276 = pneg %p56
        $region38: #{tpu_custom_call.1} parent=35 // pred_check_branch
          %278 = sbr.rel (%p276) target = $region40
        $region39: #{tpu_custom_call.1} parent=35 // pred_region
          %279 = dma.done %s272, 4096
        $region40: #{tpu_custom_call.1} parent=35 // pred_fallthru
          _
        %s280 = sand.u32 %s21, 1
        %s281 = scalar_lea.sflag [#allocation5], %s280
        %s282 = sand.u32 %s71, 1
        %s283 = smul.addr %s282, 64
        %s284 = scalar_lea.vmem [#allocation4], %s283
        // Predicated region
        $region41: #{tpu_custom_call.1} parent=35 // pred_check
          %p285 = pneg %p84
        $region42: #{tpu_custom_call.1} parent=35 // pred_check_branch
          %287 = sbr.rel (%p285) target = $region44
        $region43: #{tpu_custom_call.1} parent=35 // pred_region
          %288 = dma.done %s281, 1024
        $region44: #{tpu_custom_call.1} parent=35 // pred_fallthru
          _
        %s289 = sand.u32 %s21, 1
        %s290 = scalar_lea.sflag [#allocation5], %s289
        %s291 = sand.u32 %s99, 1
        %s292 = smul.addr %s291, 8
        %s293 = scalar_lea.vmem [#allocation6], %s292
        // Predicated region
        $region45: #{tpu_custom_call.1} parent=35 // pred_check
          %p294 = pneg %p112
        $region46: #{tpu_custom_call.1} parent=35 // pred_check_branch
          %296 = sbr.rel (%p294) target = $region48
        $region47: #{tpu_custom_call.1} parent=35 // pred_region
          %297 = dma.done %s290, 128
        $region48: #{tpu_custom_call.1} parent=35 // pred_fallthru
          _
        %s298 = sand.u32 %s43, 1
        %s299 = scalar_lea.sflag [#allocation3], %s298
        %s300 = sand.u32 %s43, 1
        %s301 = smul.addr %s300, 256
        %s302 = scalar_lea.vmem [#allocation2], %s301
        %p303 = pneg %p56
        %p304 = pneg %p53
        %s305 = sand.u32 %s21, 1
        %s306 = scalar_lea.sflag [#allocation5], %s305
        %s307 = sand.u32 %s71, 1
        %s308 = smul.addr %s307, 64
        %s309 = scalar_lea.vmem [#allocation4], %s308
        %p310 = pneg %p84
        %p311 = pneg %p81
        %s312 = sand.u32 %s21, 1
        %s313 = scalar_lea.sflag [#allocation5], %s312
        %s314 = sand.u32 %s99, 1
        %s315 = smul.addr %s314, 8
        %s316 = scalar_lea.vmem [#allocation6], %s315
        %p317 = pneg %p112
        %p318 = pneg %p109
        %s319 = smul.u32 2, %s26
        %p320 = scmp.lt.s32.totalorder %s25, 1
        %s321 = scalar_select %p320, %s25, 1
        %p322 = scmp.lt.s32.totalorder %s319, 1
        %s323 = scalar_select %p322, %s319, 1
        %s324 = smul.addr %s321, 2
        %s325 = sadd.s32 %s323, %s324
        %s326 = scalar_lea.vmem %s3, %s325
        %p327 = pneg %p140
        %p328 = pneg %p137
        %p329 = pneg %p166
        %p330 = pneg %p163
        %p331 = scmp.lt.s32.totalorder %s25, 1
        %s332 = scalar_select %p331, %s25, 1
        %s333 = scalar_lea.vmem %s4, %s332
        %s334 = smul.u32 2, %s26
        %s335 = smul.u32 2, %s26
        %s336 = smul.u32 2, %s26
        %s337 = smul.u32 2, %s26
        %p338 = scmp.lt.s32.totalorder %s25, 1
        %s339 = scalar_select %p338, %s25, 1
        %p340 = scmp.lt.s32.totalorder %s337, 1
        %s341 = scalar_select %p340, %s337, 1
        %s342 = smul.addr %s339, 2
        %s343 = sadd.s32 %s341, %s342
        %s344 = scalar_lea.vmem %s3, %s343
        %s345 = smul.u32 2, %s26
        %p346 = scmp.lt.s32.totalorder %s25, 1
        %s347 = scalar_select %p346, %s25, 1
        %s348 = scalar_lea.vmem %s4, %s347
        %p349 = scmp.eq.s32.totalorder %s26, 0
        // Predicated region
        $region49: #{tpu_custom_call.1} parent=35 // pred_check
          %p350 = pneg %p349
        $region50: #{tpu_custom_call.1} parent=35 // pred_check_branch
          %352 = sbr.rel (%p350) target = $region52
        $region51: #{tpu_custom_call.1} parent=35 // pred_region
          %vm353 = vcmask 0
          %354 = vst.msk [vmem:[%s348] sm:$0x1] %vm353, 0.0
        $region52: #{tpu_custom_call.1} parent=35 // pred_fallthru
          _
        %v355 = vld [vmem:[%s284] sm:$0xff]
        %v356 = vld [vmem:[%s284 + $0x8] sm:$0xff]
        %v357 = vld [vmem:[%s284 + $0x10] sm:$0xff]
        %v358 = vld [vmem:[%s284 + $0x18] sm:$0xff]
        %v359 = vld [vmem:[%s284 + $0x20] sm:$0xff]
        %v360 = vld [vmem:[%s284 + $0x28] sm:$0xff]
        %v361 = vld [vmem:[%s284 + $0x30] sm:$0xff]
        %v362 = vld [vmem:[%s284 + $0x38] sm:$0xff]
        %v363 = vld [vmem:[%s275] sm:$0xff]
        %v364 = vld [vmem:[%s275 + $0x8] sm:$0xff]
        %v365 = vld [vmem:[%s275 + $0x10] sm:$0xff]
        %v366 = vld [vmem:[%s275 + $0x18] sm:$0xff]
        %v367 = vld [vmem:[%s275 + $0x20] sm:$0xff]
        %v368 = vld [vmem:[%s275 + $0x28] sm:$0xff]
        %v369 = vld [vmem:[%s275 + $0x30] sm:$0xff]
        %v370 = vld [vmem:[%s275 + $0x38] sm:$0xff]
        %v371 = vmul.f32 %v363, %v363
        %v372 = vmul.f32 %v364, %v364
        %v373 = vmul.f32 %v365, %v365
        %v374 = vmul.f32 %v366, %v366
        %v375 = vmul.f32 %v367, %v367
        %v376 = vmul.f32 %v368, %v368
        %v377 = vmul.f32 %v369, %v369
        %v378 = vmul.f32 %v370, %v370
        %v379 = vadd.f32 %v371, %v373
        %v380 = vadd.f32 %v379, %v375
        %v381 = vadd.f32 %v380, %v377
        %v382 = vrot.slane %v381, 4
        %v383 = vadd.f32 %v381, %v382
        %v384 = vrot.slane %v383, 2
        %v385 = vadd.f32 %v383, %v384
        %v386 = vrot.slane %v385, 1
        %v387 = vadd.f32 %v385, %v386
        %v388 = vadd.f32 %v372, %v374
        %v389 = vadd.f32 %v388, %v376
        %v390 = vadd.f32 %v389, %v378
        %v391 = vrot.slane %v390, 4
        %v392 = vadd.f32 %v390, %v391
        %v393 = vrot.slane %v392, 2
        %v394 = vadd.f32 %v392, %v393
        %v395 = vrot.slane %v394, 1
        %v396 = vadd.f32 %v394, %v395
        %v397 = vmul.f32 %v363, %v355
        %v398 = vmul.f32 %v364, %v356
        %v399 = vmul.f32 %v365, %v357
        %v400 = vmul.f32 %v366, %v358
        %v401 = vmul.f32 %v367, %v359
        %v402 = vmul.f32 %v368, %v360
        %v403 = vmul.f32 %v369, %v361
        %v404 = vmul.f32 %v370, %v362
        %v405 = vadd.f32 %v397, %v399
        %v406 = vadd.f32 %v405, %v401
        %v407 = vadd.f32 %v406, %v403
        %v408 = vrot.slane %v407, 4
        %v409 = vadd.f32 %v407, %v408
        %v410 = vrot.slane %v409, 2
        %v411 = vadd.f32 %v409, %v410
        %v412 = vrot.slane %v411, 1
        %v413 = vadd.f32 %v411, %v412
        %v414 = vadd.f32 %v398, %v400
        %v415 = vadd.f32 %v414, %v402
        %v416 = vadd.f32 %v415, %v404
        %v417 = vrot.slane %v416, 4
        %v418 = vadd.f32 %v416, %v417
        %v419 = vrot.slane %v418, 2
        %v420 = vadd.f32 %v418, %v419
        %v421 = vrot.slane %v420, 1
        %v422 = vadd.f32 %v420, %v421
        %v423 = vmax.f32 %v387, 1e-24
        %v424 = vmax.f32 %v396, 1e-24
        %v425 = vrsqrt.pop %v423
        %v426 = vrsqrt.pop %v424
        %v427 = vmul.f32 %v413, %v425
        %v428 = vmul.f32 %v422, %v426
        %v429 = vld [vmem:[%s293] ss:$4 sm:$0x3]
        %v431 = vlaneseq
        %v432 = vshrl.u32 %v431, 7
        %v433 = vsub.s32 0, %v432
        %v434 = vrot.slane %v429, %v433
        %v435 = vlaneseq
        %v436 = vshrl.u32 %v435, 7
        %v437 = vsub.s32 1, %v436
        %v438 = vrot.slane %v429, %v437
        %v441 = vmul.f32 %v427, %v434
        %v442 = vmul.f32 %v428, %v438
        %s443 = scalar_lea.vmem %s275, 64 [#allocation2]
        %v444 = vld [vmem:[%s443] sm:$0xff]
        %v445 = vld [vmem:[%s443 + $0x8] sm:$0xff]
        %v446 = vld [vmem:[%s443 + $0x10] sm:$0xff]
        %v447 = vld [vmem:[%s443 + $0x18] sm:$0xff]
        %v448 = vld [vmem:[%s443 + $0x20] sm:$0xff]
        %v449 = vld [vmem:[%s443 + $0x28] sm:$0xff]
        %v450 = vld [vmem:[%s443 + $0x30] sm:$0xff]
        %v451 = vld [vmem:[%s443 + $0x38] sm:$0xff]
        %v452 = vmul.f32 %v444, %v444
        %v453 = vmul.f32 %v445, %v445
        %v454 = vmul.f32 %v446, %v446
        %v455 = vmul.f32 %v447, %v447
        %v456 = vmul.f32 %v448, %v448
        %v457 = vmul.f32 %v449, %v449
        %v458 = vmul.f32 %v450, %v450
        %v459 = vmul.f32 %v451, %v451
        %v460 = vadd.f32 %v452, %v454
        %v461 = vadd.f32 %v460, %v456
        %v462 = vadd.f32 %v461, %v458
        %v463 = vrot.slane %v462, 4
        %v464 = vadd.f32 %v462, %v463
        %v465 = vrot.slane %v464, 2
        %v466 = vadd.f32 %v464, %v465
        %v467 = vrot.slane %v466, 1
        %v468 = vadd.f32 %v466, %v467
        %v469 = vadd.f32 %v453, %v455
        %v470 = vadd.f32 %v469, %v457
        %v471 = vadd.f32 %v470, %v459
        %v472 = vrot.slane %v471, 4
        %v473 = vadd.f32 %v471, %v472
        %v474 = vrot.slane %v473, 2
        %v475 = vadd.f32 %v473, %v474
        %v476 = vrot.slane %v475, 1
        %v477 = vadd.f32 %v475, %v476
        %v478 = vmul.f32 %v444, %v355
        %v479 = vmul.f32 %v445, %v356
        %v480 = vmul.f32 %v446, %v357
        %v481 = vmul.f32 %v447, %v358
        %v482 = vmul.f32 %v448, %v359
        %v483 = vmul.f32 %v449, %v360
        %v484 = vmul.f32 %v450, %v361
        %v485 = vmul.f32 %v451, %v362
        %v486 = vadd.f32 %v478, %v480
        %v487 = vadd.f32 %v486, %v482
        %v488 = vadd.f32 %v487, %v484
        %v489 = vrot.slane %v488, 4
        %v490 = vadd.f32 %v488, %v489
        %v491 = vrot.slane %v490, 2
        %v492 = vadd.f32 %v490, %v491
        %v493 = vrot.slane %v492, 1
        %v494 = vadd.f32 %v492, %v493
        %v495 = vadd.f32 %v479, %v481
        %v496 = vadd.f32 %v495, %v483
        %v497 = vadd.f32 %v496, %v485
        %v498 = vrot.slane %v497, 4
        %v499 = vadd.f32 %v497, %v498
        %v500 = vrot.slane %v499, 2
        %v501 = vadd.f32 %v499, %v500
        %v502 = vrot.slane %v501, 1
        %v503 = vadd.f32 %v501, %v502
        %v504 = vmax.f32 %v468, 1e-24
        %v505 = vmax.f32 %v477, 1e-24
        %v506 = vrsqrt.pop %v504
        %v507 = vrsqrt.pop %v505
        %v508 = vmul.f32 %v494, %v506
        %v509 = vmul.f32 %v503, %v507
        %s510 = scalar_lea.vmem %s293, 1 [#allocation6]
        %v511 = vld [vmem:[%s510] ss:$4 sm:$0x3]
        %v513 = vlaneseq
        %v514 = vshrl.u32 %v513, 7
        %v515 = vsub.s32 0, %v514
        %v516 = vrot.slane %v511, %v515
        %v517 = vlaneseq
        %v518 = vshrl.u32 %v517, 7
        %v519 = vsub.s32 1, %v518
        %v520 = vrot.slane %v511, %v519
        %v523 = vmul.f32 %v508, %v516
        %v524 = vmul.f32 %v509, %v520
        %v525 = vadd.f32 %v441, %v523
        %v526 = vadd.f32 %v442, %v524
        %s527 = scalar_lea.vmem %s275, 128 [#allocation2]
        %v528 = vld [vmem:[%s527] sm:$0xff]
        %v529 = vld [vmem:[%s527 + $0x8] sm:$0xff]
        %v530 = vld [vmem:[%s527 + $0x10] sm:$0xff]
        %v531 = vld [vmem:[%s527 + $0x18] sm:$0xff]
        %v532 = vld [vmem:[%s527 + $0x20] sm:$0xff]
        %v533 = vld [vmem:[%s527 + $0x28] sm:$0xff]
        %v534 = vld [vmem:[%s527 + $0x30] sm:$0xff]
        %v535 = vld [vmem:[%s527 + $0x38] sm:$0xff]
        %v536 = vmul.f32 %v528, %v528
        %v537 = vmul.f32 %v529, %v529
        %v538 = vmul.f32 %v530, %v530
        %v539 = vmul.f32 %v531, %v531
        %v540 = vmul.f32 %v532, %v532
        %v541 = vmul.f32 %v533, %v533
        %v542 = vmul.f32 %v534, %v534
        %v543 = vmul.f32 %v535, %v535
        %v544 = vadd.f32 %v536, %v538
        %v545 = vadd.f32 %v544, %v540
        %v546 = vadd.f32 %v545, %v542
        %v547 = vrot.slane %v546, 4
        %v548 = vadd.f32 %v546, %v547
        %v549 = vrot.slane %v548, 2
        %v550 = vadd.f32 %v548, %v549
        %v551 = vrot.slane %v550, 1
        %v552 = vadd.f32 %v550, %v551
        %v553 = vadd.f32 %v537, %v539
        %v554 = vadd.f32 %v553, %v541
        %v555 = vadd.f32 %v554, %v543
        %v556 = vrot.slane %v555, 4
        %v557 = vadd.f32 %v555, %v556
        %v558 = vrot.slane %v557, 2
        %v559 = vadd.f32 %v557, %v558
        %v560 = vrot.slane %v559, 1
        %v561 = vadd.f32 %v559, %v560
        %v562 = vmul.f32 %v528, %v355
        %v563 = vmul.f32 %v529, %v356
        %v564 = vmul.f32 %v530, %v357
        %v565 = vmul.f32 %v531, %v358
        %v566 = vmul.f32 %v532, %v359
        %v567 = vmul.f32 %v533, %v360
        %v568 = vmul.f32 %v534, %v361
        %v569 = vmul.f32 %v535, %v362
        %v570 = vadd.f32 %v562, %v564
        %v571 = vadd.f32 %v570, %v566
        %v572 = vadd.f32 %v571, %v568
        %v573 = vrot.slane %v572, 4
        %v574 = vadd.f32 %v572, %v573
        %v575 = vrot.slane %v574, 2
        %v576 = vadd.f32 %v574, %v575
        %v577 = vrot.slane %v576, 1
        %v578 = vadd.f32 %v576, %v577
        %v579 = vadd.f32 %v563, %v565
        %v580 = vadd.f32 %v579, %v567
        %v581 = vadd.f32 %v580, %v569
        %v582 = vrot.slane %v581, 4
        %v583 = vadd.f32 %v581, %v582
        %v584 = vrot.slane %v583, 2
        %v585 = vadd.f32 %v583, %v584
        %v586 = vrot.slane %v585, 1
        %v587 = vadd.f32 %v585, %v586
        %v588 = vmax.f32 %v552, 1e-24
        %v589 = vmax.f32 %v561, 1e-24
        %v590 = vrsqrt.pop %v588
        %v591 = vrsqrt.pop %v589
        %v592 = vmul.f32 %v578, %v590
        %v593 = vmul.f32 %v587, %v591
        %s594 = scalar_lea.vmem %s293, 2 [#allocation6]
        %v595 = vld [vmem:[%s594] ss:$4 sm:$0x3]
        %v597 = vlaneseq
        %v598 = vshrl.u32 %v597, 7
        %v599 = vsub.s32 0, %v598
        %v600 = vrot.slane %v595, %v599
        %v601 = vlaneseq
        %v602 = vshrl.u32 %v601, 7
        %v603 = vsub.s32 1, %v602
        %v604 = vrot.slane %v595, %v603
        %v607 = vmul.f32 %v592, %v600
        %v608 = vmul.f32 %v593, %v604
        %v609 = vadd.f32 %v525, %v607
        %v610 = vadd.f32 %v526, %v608
        %s611 = scalar_lea.vmem %s275, 192 [#allocation2]
        %v612 = vld [vmem:[%s611] sm:$0xff]
        %v613 = vld [vmem:[%s611 + $0x8] sm:$0xff]
        %v614 = vld [vmem:[%s611 + $0x10] sm:$0xff]
        %v615 = vld [vmem:[%s611 + $0x18] sm:$0xff]
        %v616 = vld [vmem:[%s611 + $0x20] sm:$0xff]
        %v617 = vld [vmem:[%s611 + $0x28] sm:$0xff]
        %v618 = vld [vmem:[%s611 + $0x30] sm:$0xff]
        %v619 = vld [vmem:[%s611 + $0x38] sm:$0xff]
        %v620 = vmul.f32 %v612, %v612
        %v621 = vmul.f32 %v613, %v613
        %v622 = vmul.f32 %v614, %v614
        %v623 = vmul.f32 %v615, %v615
        %v624 = vmul.f32 %v616, %v616
        %v625 = vmul.f32 %v617, %v617
        %v626 = vmul.f32 %v618, %v618
        %v627 = vmul.f32 %v619, %v619
        %v628 = vadd.f32 %v620, %v622
        %v629 = vadd.f32 %v628, %v624
        %v630 = vadd.f32 %v629, %v626
        %v631 = vrot.slane %v630, 4
        %v632 = vadd.f32 %v630, %v631
        %v633 = vrot.slane %v632, 2
        %v634 = vadd.f32 %v632, %v633
        %v635 = vrot.slane %v634, 1
        %v636 = vadd.f32 %v634, %v635
        %v637 = vadd.f32 %v621, %v623
        %v638 = vadd.f32 %v637, %v625
        %v639 = vadd.f32 %v638, %v627
        %v640 = vrot.slane %v639, 4
        %v641 = vadd.f32 %v639, %v640
        %v642 = vrot.slane %v641, 2
        %v643 = vadd.f32 %v641, %v642
        %v644 = vrot.slane %v643, 1
        %v645 = vadd.f32 %v643, %v644
        %v646 = vmul.f32 %v612, %v355
        %v647 = vmul.f32 %v613, %v356
        %v648 = vmul.f32 %v614, %v357
        %v649 = vmul.f32 %v615, %v358
        %v650 = vmul.f32 %v616, %v359
        %v651 = vmul.f32 %v617, %v360
        %v652 = vmul.f32 %v618, %v361
        %v653 = vmul.f32 %v619, %v362
        %v654 = vadd.f32 %v646, %v648
        %v655 = vadd.f32 %v654, %v650
        %v656 = vadd.f32 %v655, %v652
        %v657 = vrot.slane %v656, 4
        %v658 = vadd.f32 %v656, %v657
        %v659 = vrot.slane %v658, 2
        %v660 = vadd.f32 %v658, %v659
        %v661 = vrot.slane %v660, 1
        %v662 = vadd.f32 %v660, %v661
        %v663 = vadd.f32 %v647, %v649
        %v664 = vadd.f32 %v663, %v651
        %v665 = vadd.f32 %v664, %v653
        %v666 = vrot.slane %v665, 4
        %v667 = vadd.f32 %v665, %v666
        %v668 = vrot.slane %v667, 2
        %v669 = vadd.f32 %v667, %v668
        %v670 = vrot.slane %v669, 1
        %v671 = vadd.f32 %v669, %v670
        %v672 = vmax.f32 %v636, 1e-24
        %v673 = vmax.f32 %v645, 1e-24
        %v674 = vrsqrt.pop %v672
        %v675 = vrsqrt.pop %v673
        %v676 = vmul.f32 %v662, %v674
        %v677 = vmul.f32 %v671, %v675
        %s678 = scalar_lea.vmem %s293, 3 [#allocation6]
        %v679 = vld [vmem:[%s678] ss:$4 sm:$0x3]
        %v681 = vlaneseq
        %v682 = vshrl.u32 %v681, 7
        %v683 = vsub.s32 0, %v682
        %v684 = vrot.slane %v679, %v683
        %v685 = vlaneseq
        %v686 = vshrl.u32 %v685, 7
        %v687 = vsub.s32 1, %v686
        %v688 = vrot.slane %v679, %v687
        %v691 = vmul.f32 %v676, %v684
        %v692 = vmul.f32 %v677, %v688
        %v693 = vadd.f32 %v609, %v691
        %v694 = vadd.f32 %v610, %v692
        %v695 = vld [vmem:[%s344] sm:$0x3]
        %v696 = vmul.f32 %v693, 0.5
        %v697 = vmul.f32 %v694, 0.5
        %v698 = vadd.f32 %v696, 0.5
        %v699 = vadd.f32 %v697, 0.5
        %v700 = vmax.f32 %v698, 1e-08
        %v701 = vmax.f32 %v699, 1e-08
        %v702 = vmin.f32 %v700, 1.0
        %v703 = vmin.f32 %v701, 1.0
        %v704 = vmul.f32 %v695, 0.5
        %v705 = vadd.f32 %v704, 0.5
        %v706 = vmul.f32 %v702, 10.0
        %v707 = vmul.f32 %v703, 10.0
        %v708 = vmul.f32 %v705, 10.0
        %v710 = vlaneseq
        %v711 = vshrl.u32 %v710, 7
        %v712 = vsub.s32 0, %v711
        %v713 = vrot.slane %v708, %v712
        %v714 = vlaneseq
        %v715 = vshrl.u32 %v714, 7
        %v716 = vsub.s32 1, %v715
        %v717 = vrot.slane %v708, %v716
        %v720 = vmax.f32 %v706, %v713
        %v721 = vmax.f32 %v707, %v717
        %v722 = vsub.f32 %v706, %v720
        %v723 = vsub.f32 %v707, %v721
        %v724 = vmul.f32 %v722, 1.442695
        %v725 = vpow.pop %v724
        %v726 = vmul.f32 %v723, 1.442695
        %v727 = vpow.pop %v726
        %v730 = vcombine.low %v720, %v721
        %v732 = vunpack.c.l.s4 1966171168
        %v733 = vunpack.c.0.s8 %v732
        %v734 = vlaneseq
        %v735 = vshrl.u32 %v734, 7
        %v736 = vsub.s32 %v733, %v735
        %v737 = vrot.slane %v730, %v736
        %v739 = vunpack.c.l.s4 1966171168
        %v740 = vunpack.c.0.s8 %v739
        %v741 = vlaneseq
        %v742 = vshrl.u32 %v741, 7
        %v743 = vsub.s32 %v740, %v742
        %v744 = vrot.slane %v737, %v743
        %v746 = vsub.f32 %v708, %v744
        %v747 = vmul.f32 %v746, 1.442695
        %v748 = vpow.pop %v747
        %v749 = vmul.f32 %v702, %v725
        %v750 = vmul.f32 %v703, %v727
        %v751 = vmul.f32 %v705, %v748
        %v753 = vlaneseq
        %v754 = vshrl.u32 %v753, 7
        %v755 = vsub.s32 0, %v754
        %v756 = vrot.slane %v751, %v755
        %v757 = vlaneseq
        %v758 = vshrl.u32 %v757, 7
        %v759 = vsub.s32 1, %v758
        %v760 = vrot.slane %v751, %v759
        %v763 = vadd.f32 %v749, %v756
        %v764 = vadd.f32 %v750, %v760
        %v766 = vlaneseq
        %v767 = vshrl.u32 %v766, 7
        %v768 = vsub.s32 0, %v767
        %v769 = vrot.slane %v748, %v768
        %v770 = vlaneseq
        %v771 = vshrl.u32 %v770, 7
        %v772 = vsub.s32 1, %v771
        %v773 = vrot.slane %v748, %v772
        %v776 = vadd.f32 %v725, %v769
        %v777 = vadd.f32 %v727, %v773
        %v778 = vrcp.pop %v776
        %v779 = vrcp.pop %v777
        %v780 = vmul.f32 %v763, %v778
        %v781 = vmul.f32 %v764, %v779
        %v782 = vld [vmem:[%s348] sm:$0x1]
        %vm783 = vcmask 1040384
        %v784 = vsel %vm783, %v780, 0.0
        %v785 = vsel %vm783, %v781, 0.0
        %v786 = vadd.f32 %v784, %v785
        %787 = vadd.xlane.f32.xlu0 %v786
        %v788 = vpop.xlane.xlu0 %787
        %v789 = vrot.slane %v788, 4
        %v790 = vadd.f32 %v788, %v789
        %v791 = vrot.slane %v790, 2
        %v792 = vadd.f32 %v790, %v791
        %v793 = vrot.slane %v792, 1
        %v794 = vadd.f32 %v792, %v793
        %s795 = vtos %v794
        %v796 = vstv %s795
        %v797 = vadd.f32 %v782, %v796
        %vm798 = vcmask 0
        %799 = vst.msk [vmem:[%s348] sm:$0x1] %vm798, %v797
        // Predicated region
        $region53: #{tpu_custom_call.1} parent=35 // pred_check
          %p800 = pneg %p349
        $region54: #{tpu_custom_call.1} parent=35 // pred_check_branch
          %802 = sbr.rel (%p800) target = $region56
        $region55: #{tpu_custom_call.1} parent=35 // pred_region
          %v803 = vld [vmem:[%s348] sm:$0x1]
          %v804 = vmul.f32 %v803, 0.00390625
          %v805 = vsub.f32 1.0, %v804
          %806 = vst.msk [vmem:[%s348] sm:$0x1] %vm798, %v805
        $region56: #{tpu_custom_call.1} parent=35 // pred_fallthru
          _
        %p807 = scmp.lt.s32.totalorder %s25, 1
        %s808 = scalar_select %p807, %s25, 1
        %s809 = scalar_lea.vmem %s4, %s808
        // Predicated region
        $region57: #{tpu_custom_call.1} parent=35 // pred_check
          %p810 = pneg %p163
        $region58: #{tpu_custom_call.1} parent=35 // pred_check_branch
          %812 = sbr.rel (%p810) target = $region60
        $region59: #{tpu_custom_call.1} parent=35 // pred_region
          _
        $region60: #{tpu_custom_call.1} parent=35 // pred_fallthru
          _
      $region36: #{tpu_custom_call.1} parent=5 // pred_fallthru
        _
      %p813 = scmp.le.s32.totalorder 2, %s16
      // Predicated region
      $region61: #{tpu_custom_call.1} parent=5 // pred_check
        %p814 = pneg %p813
      $region62: #{tpu_custom_call.1} parent=5 // pred_check_branch
        %816 = sbr.rel (%p814) target = $region64
      $region63: #{tpu_custom_call.1} parent=5 // pred_region
        %s817 = ssub.s32 %s16, 2
        // Predicated region
        $region65: #{tpu_custom_call.1} parent=63 // pred_check
          %p818 = pneg %p169
        $region66: #{tpu_custom_call.1} parent=63 // pred_check_branch
          %820 = sbr.rel (%p818) target = $region68
        $region67: #{tpu_custom_call.1} parent=63 // pred_region
          %p821 = scmp.lt.s32.totalorder %s27, 1
          %s822 = scalar_select %p821, %s27, 1
          %s823 = scalar_lea.vmem %s4, %s822
        $region68: #{tpu_custom_call.1} parent=63 // pred_fallthru
          _
      $region64: #{tpu_custom_call.1} parent=5 // pred_fallthru
        _
    $region6: #{tpu_custom_call.1} parent=1 // loop_footer
      %s20 = sadd.s32 1, %s16
    $region7: #{tpu_custom_call.1} parent=1 // loop_footer_branch
      %15 = sbr.rel target = $region3
    $region8: #{tpu_custom_call.1} parent=1 // loop_exit
      _
    %824 = vsyncpa [#allocation3], 1
    %s825 = scalar_lea.sflag [#allocation3], 1
    %826 = vsyncpa %s825, 1
    %827 = vsyncpa [#allocation5], 1
    %s828 = scalar_lea.sflag [#allocation5], 1
    %829 = vsyncpa %s828, 1

</llo_original>
